<compile_context>
chip_gen: v5e
topology: v5e:2x2
jax: 0.10.0
libtpu: 0.0.40
codegen_flags: <defaults>
</compile_context>

<pallas_src>
import jax
import jax.numpy as jnp
from jax.experimental import pallas as pl
from jax.experimental.pallas import tpu as pltpu

_SUBLANE = 8
_LANE = 128


# ------------------------------ small helpers -------------------------------

def _cdiv(a, b):
    return -(-a // b)


def _round_up(x, m):
    return _cdiv(x, m) * m


def _vmem_capacity_bytes():
    try:
        return int(pltpu.get_tpu_info().vmem_capacity_bytes)
    except Exception:
        return 64 * 1024 * 1024          # conservative (v7x-sized) fallback


def _vmem_budgets():
    """Returns (streamed double-buffered budget, vmem_limit_bytes)."""
    cap = _vmem_capacity_bytes()
    if cap >= 96 * 1024 * 1024:          # v5e / v6e: 128 MiB physical VMEM
        return 28 * 1024 * 1024, 64 * 1024 * 1024
    return 20 * 1024 * 1024, 48 * 1024 * 1024   # v7x: 64 MiB physical VMEM


def _compiler_params(vmem_limit_bytes):
    # "parallel" lets the runtime shard the row-tile axis across TensorCores
    # on v7x megacore parts; harmless on single-core v5e/v6e.
    return pltpu.CompilerParams(
        dimension_semantics=("parallel",),
        vmem_limit_bytes=vmem_limit_bytes,
    )


def _choose_tile_n(n, streamed_row_bytes, temp_row_bytes, budget_bytes,
                   max_tile=None):
    """Largest row tile (multiple of 8) whose double-buffered streamed blocks
    plus in-kernel f32 temporaries fit the VMEM budget; keeps the grid at
    >= 2 steps whenever N allows."""
    n = int(n)
    if n <= _SUBLANE:
        return max(n, 1)                 # single full-extent block
    per_row = 2 * int(streamed_row_bytes) + int(temp_row_bytes)
    tile = budget_bytes // max(per_row, 1)
    tile = max(_SUBLANE, (tile // _SUBLANE) * _SUBLANE)
    tile = min(tile, _round_up(_cdiv(n, 2), _SUBLANE))   # force grid >= 2
    if max_tile is not None:
        tile = min(tile, max(_SUBLANE, (int(max_tile) // _SUBLANE) * _SUBLANE))
    return tile


# ------------------------------ Pallas kernels ------------------------------

def _make_hard_ce_kernel(has_cw):
    """Per-sample -cw[y] * log_softmax(pred)[y], without materialising logp."""
    def kernel(*refs):
        if has_cw:
            pred_ref, label_ref, cw_ref, out_ref = refs
        else:
            pred_ref, label_ref, out_ref = refs
            cw_ref = None
        x = pred_ref[...].astype(jnp.float32)                      # (T, C)
        m = jnp.max(x, axis=-1, keepdims=True)
        z = x - m
        lse = jnp.log(jnp.sum(jnp.exp(z), axis=-1, keepdims=True))  # (T, 1)
        col = jax.lax.broadcasted_iota(jnp.int32, x.shape, 1)
        sel = col == label_ref[...]                                # (T, C)
        z_y = jnp.sum(jnp.where(sel, z, 0.0), axis=-1, keepdims=True)
        loss = lse - z_y                                           # -logp[y]
        if has_cw:
            cw_y = jnp.sum(jnp.where(sel, cw_ref[...], 0.0),
                           axis=-1, keepdims=True)
            loss = cw_y * loss
        out_ref[...] = loss
    return kernel


def _make_soft_ce_kernel(has_cw):
    """Per-sample sum_c(-label * log_softmax(pred) * cw) as a (T, 1) column."""
    def kernel(*refs):
        if has_cw:
            pred_ref, label_ref, cw_ref, out_ref = refs
        else:
            pred_ref, label_ref, out_ref = refs
            cw_ref = None
        x = pred_ref[...].astype(jnp.float32)
        m = jnp.max(x, axis=-1, keepdims=True)
        z = x - m
        lse = jnp.log(jnp.sum(jnp.exp(z), axis=-1, keepdims=True))
        logp = z - lse
        t = label_ref[...].astype(jnp.float32) * logp
        if has_cw:
            t = t * cw_ref[...]
        out_ref[...] = -jnp.sum(t, axis=-1, keepdims=True)
    return kernel


def _bce_elements(x, y, cw, pw):
    """Stable BCE-with-logits via softplus(-x) = softplus(x) - x."""
    sp = jnp.maximum(x, 0.0) + jnp.log1p(jnp.exp(-jnp.abs(x)))     # softplus(x)
    if pw is None:
        loss = sp - y * x
    else:
        loss = sp * (1.0 + y * (pw - 1.0)) - (pw * y) * x
    if cw is not None:
        loss = cw * loss
    return loss


def _make_bce_full_kernel(has_w, has_cw, has_pw):
    """Elementwise BCE, sample-weight fused, output in caller dtype."""
    def kernel(*refs):
        refs = list(refs)
        pred_ref = refs.pop(0)
        label_ref = refs.pop(0)
        w_ref = refs.pop(0) if has_w else None
        cw_ref = refs.pop(0) if has_cw else None
        pw_ref = refs.pop(0) if has_pw else None
        out_ref = refs.pop(0)
        x = pred_ref[...].astype(jnp.float32)
        y = label_ref[...].astype(jnp.float32)
        loss = _bce_elements(x, y,
                             cw_ref[...] if has_cw else None,
                             pw_ref[...] if has_pw else None)
        if has_w:
            loss = loss * w_ref[...]
        out_ref[...] = loss.astype(out_ref.dtype)
    return kernel


def _make_bce_rowsum_kernel(has_cw, has_pw):
    """BCE with the class-axis reduction fused in-kernel -> (T, 1) column."""
    def kernel(*refs):
        refs = list(refs)
        pred_ref = refs.pop(0)
        label_ref = refs.pop(0)
        cw_ref = refs.pop(0) if has_cw else None
        pw_ref = refs.pop(0) if has_pw else None
        out_ref = refs.pop(0)
        x = pred_ref[...].astype(jnp.float32)
        y = label_ref[...].astype(jnp.float32)
        loss = _bce_elements(x, y,
                             cw_ref[...] if has_cw else None,
                             pw_ref[...] if has_pw else None)
        out_ref[...] = jnp.sum(loss, axis=-1, keepdims=True)
    return kernel


# --------------------------- reduction utilities ----------------------------

def reduce_loss(loss, reduction):
    if reduction == 'none':
        return loss
    if reduction == 'mean':
        return loss.mean()
    if reduction == 'sum':
        return loss.sum()
    raise ValueError(f'invalid reduction: {reduction}')


def weight_reduce_loss(loss, weight=None, reduction='mean', avg_factor=None):
    if weight is not None:
        loss = loss * weight
    if avg_factor is None:
        loss = reduce_loss(loss, reduction)
    else:
        if reduction == 'mean':
            eps = jnp.finfo(jnp.float32).eps
            loss = loss.sum() / (avg_factor + eps)
        elif reduction != 'none':
            raise ValueError('avg_factor can not be used with reduction="sum"')
    return loss


# ------------------------------- loss wrappers -------------------------------

def cross_entropy(pred, label, weight=None, reduction='mean', avg_factor=None,
                  class_weight=None, *, _max_tile_n=None):
    """Softmax cross entropy with integer labels.

    Note: reduction='mean' with class_weight divides by N (flabcls semantics:
    loss is computed with reduction='none' and then averaged), not by the sum
    of selected class weights as torch's built-in 'mean' would.
    """
    n, c = pred.shape
    has_cw = class_weight is not None
    budget, vmem_limit = _vmem_budgets()
    cl = _round_up(c, _LANE)
    pred_it = jnp.dtype(pred.dtype).itemsize
    streamed = cl * pred_it + _LANE * 4 + _LANE * 4      # pred + label + out
    tile_n = _choose_tile_n(n, streamed, 4 * cl * 4, budget, _max_tile_n)
    grid = _cdiv(n, tile_n)

    in_specs = [pl.BlockSpec((tile_n, c), lambda i: (i, 0)),
                pl.BlockSpec((tile_n, 1), lambda i: (i, 0))]
    args = [pred, jnp.asarray(label, jnp.int32).reshape(n, 1)]
    if has_cw:
        in_specs.append(pl.BlockSpec((1, c), lambda i: (0, 0)))
        args.append(jnp.asarray(class_weight, jnp.float32).reshape(1, c))

    per_sample = pl.pallas_call(
        _make_hard_ce_kernel(has_cw),
        grid=(grid,),
        in_specs=in_specs,
        out_specs=pl.BlockSpec((tile_n, 1), lambda i: (i, 0)),
        out_shape=jax.ShapeDtypeStruct((n, 1), jnp.float32),
        compiler_params=_compiler_params(vmem_limit),
    )(*args)[:, 0]

    if weight is not None:
        weight = jnp.asarray(weight, jnp.float32)
    return weight_reduce_loss(per_sample, weight=weight, reduction=reduction,
                              avg_factor=avg_factor)


def soft_cross_entropy(pred, label, weight=None, reduction='mean',
                       class_weight=None, avg_factor=None, *, _max_tile_n=None):
    n, c = pred.shape
    has_cw = class_weight is not None
    budget, vmem_limit = _vmem_budgets()
    cl = _round_up(c, _LANE)
    pred_it = jnp.dtype(pred.dtype).itemsize
    lab_it = jnp.dtype(label.dtype).itemsize
    streamed = cl * pred_it + cl * lab_it + _LANE * 4
    tile_n = _choose_tile_n(n, streamed, 4 * cl * 4, budget, _max_tile_n)
    grid = _cdiv(n, tile_n)

    in_specs = [pl.BlockSpec((tile_n, c), lambda i: (i, 0)),
                pl.BlockSpec((tile_n, c), lambda i: (i, 0))]
    args = [pred, label]
    if has_cw:
        in_specs.append(pl.BlockSpec((1, c), lambda i: (0, 0)))
        args.append(jnp.asarray(class_weight, jnp.float32).reshape(1, c))

    per_sample = pl.pallas_call(
        _make_soft_ce_kernel(has_cw),
        grid=(grid,),
        in_specs=in_specs,
        out_specs=pl.BlockSpec((tile_n, 1), lambda i: (i, 0)),
        out_shape=jax.ShapeDtypeStruct((n, 1), jnp.float32),
        compiler_params=_compiler_params(vmem_limit),
    )(*args)[:, 0]

    if weight is not None:
        weight = jnp.asarray(weight, jnp.float32)
    return weight_reduce_loss(per_sample, weight=weight, reduction=reduction,
                              avg_factor=avg_factor)


def binary_cross_entropy(pred, label, weight=None, reduction='mean',
                         avg_factor=None, class_weight=None, pos_weight=None,
                         *, _max_tile_n=None):
    assert pred.ndim == label.ndim
    squeeze_out = False
    if pred.ndim == 1:
        pred = pred[:, None]
        label = label[:, None]
        squeeze_out = True
    n, c = pred.shape
    has_cw = class_weight is not None
    has_pw = pos_weight is not None
    cw = (jnp.asarray(class_weight, jnp.float32).reshape(1, c)
          if has_cw else None)
    pw = (jnp.asarray(pos_weight, jnp.float32).reshape(1, c)
          if has_pw else None)
    if weight is not None:
        assert weight.ndim == 1
        weight = jnp.asarray(weight, jnp.float32)

    budget, vmem_limit = _vmem_budgets()
    cl = _round_up(c, _LANE)
    pred_it = jnp.dtype(pred.dtype).itemsize
    lab_it = jnp.dtype(label.dtype).itemsize
    cparams = _compiler_params(vmem_limit)

    if reduction == 'none':
        has_w = weight is not None
        out_dtype = pred.dtype           # caller dtype: halves bf16 writeback
        streamed = (cl * pred_it + cl * lab_it
                    + cl * jnp.dtype(out_dtype).itemsize
                    + (_LANE * 4 if has_w else 0))
        tile_n = _choose_tile_n(n, streamed, 4 * cl * 4, budget, _max_tile_n)
        grid = _cdiv(n, tile_n)
        in_specs = [pl.BlockSpec((tile_n, c), lambda i: (i, 0)),
                    pl.BlockSpec((tile_n, c), lambda i: (i, 0))]
        args = [pred, label]
        if has_w:
            in_specs.append(pl.BlockSpec((tile_n, 1), lambda i: (i, 0)))
            args.append(weight.reshape(n, 1))
        if has_cw:
            in_specs.append(pl.BlockSpec((1, c), lambda i: (0, 0)))
            args.append(cw)
        if has_pw:
            in_specs.append(pl.BlockSpec((1, c), lambda i: (0, 0)))
            args.append(pw)
        loss = pl.pallas_call(
            _make_bce_full_kernel(has_w, has_cw, has_pw),
            grid=(grid,),
            in_specs=in_specs,
            out_specs=pl.BlockSpec((tile_n, c), lambda i: (i, 0)),
            out_shape=jax.ShapeDtypeStruct((n, c), out_dtype),
            compiler_params=cparams,
        )(*args)
        if squeeze_out:
            loss = loss[:, 0]
        return loss                      # avg_factor has no effect for 'none'

    if reduction not in ('mean', 'sum'):
        raise ValueError(f'invalid reduction: {reduction}')

    # mean / sum: fuse the class-axis reduction in-kernel; only a (N, 1)
    # per-sample row sum is written back to HBM.
    streamed = cl * pred_it + cl * lab_it + _LANE * 4
    tile_n = _choose_tile_n(n, streamed, 4 * cl * 4, budget, _max_tile_n)
    grid = _cdiv(n, tile_n)
    in_specs = [pl.BlockSpec((tile_n, c), lambda i: (i, 0)),
                pl.BlockSpec((tile_n, c), lambda i: (i, 0))]
    args = [pred, label]
    if has_cw:
        in_specs.append(pl.BlockSpec((1, c), lambda i: (0, 0)))
        args.append(cw)
    if has_pw:
        in_specs.append(pl.BlockSpec((1, c), lambda i: (0, 0)))
        args.append(pw)
    row_sum = pl.pallas_call(
        _make_bce_rowsum_kernel(has_cw, has_pw),
        grid=(grid,),
        in_specs=in_specs,
        out_specs=pl.BlockSpec((tile_n, 1), lambda i: (i, 0)),
        out_shape=jax.ShapeDtypeStruct((n, 1), jnp.float32),
        compiler_params=cparams,
    )(*args)[:, 0]
    if weight is not None:
        row_sum = row_sum * weight
    total = row_sum.sum()
    if avg_factor is None:
        return total / (n * c) if reduction == 'mean' else total
    if reduction == 'mean':
        return total / (avg_factor + jnp.finfo(jnp.float32).eps)
    raise ValueError('avg_factor can not be used with reduction="sum"')


class CrossEntropyLoss:
    """JAX/Pallas re-implementation of flabcls CrossEntropyLoss.forward."""

    def __init__(self, use_sigmoid=False, use_soft=False, reduction='mean',
                 loss_weight=1.0, class_weight=None, pos_weight=None):
        self.use_sigmoid = use_sigmoid
        self.use_soft = use_soft
        assert not (self.use_soft and self.use_sigmoid), \
            'use_sigmoid and use_soft could not be set simultaneously'
        self.reduction = reduction
        self.loss_weight = loss_weight
        self.class_weight = class_weight
        self.pos_weight = pos_weight
        if self.use_sigmoid:
            self.cls_criterion = binary_cross_entropy
        elif self.use_soft:
            self.cls_criterion = soft_cross_entropy
        else:
            self.cls_criterion = cross_entropy

    def __call__(self, cls_score, label, weight=None, avg_factor=None,
                 reduction_override=None, **kwargs):
        assert reduction_override in (None, 'none', 'mean', 'sum')
        reduction = reduction_override if reduction_override else self.reduction
        if self.class_weight is not None:
            class_weight = jnp.asarray(self.class_weight, jnp.float32)
        else:
            class_weight = None
        if self.pos_weight is not None and self.use_sigmoid:
            kwargs.update({'pos_weight': jnp.asarray(self.pos_weight,
                                                     jnp.float32)})
        loss_cls = self.loss_weight * self.cls_criterion(
            cls_score, label, weight, class_weight=class_weight,
            reduction=reduction, avg_factor=avg_factor, **kwargs)
        return loss_cls


# ---------------------------------- demo ------------------------------------

if __name__ == "__main__":
    key = jax.random.PRNGKey(0)
    k1, k2, k3, k4, k5, k6 = jax.random.split(key, 6)

    N, C = 8, 16
    logits = jax.random.normal(k1, (N, C), dtype=jnp.float32)
    labels = jax.random.randint(k2, (N,), 0, C, dtype=jnp.int32)
    sample_w = jax.random.uniform(k3, (N,), dtype=jnp.float32)
    bin_labels = (jax.random.uniform(k4, (N, C)) > 0.5).astype(jnp.float32)

    # 1) default config: softmax cross entropy, mean reduction
    ce_loss = CrossEntropyLoss()
    out_mean = ce_loss(logits, labels)
    ref_per = -jnp.take_along_axis(jax.nn.log_softmax(logits, axis=-1),
                                   labels[:, None], axis=-1)[:, 0]
    assert jnp.allclose(out_mean, ref_per.mean(), rtol=1e-4, atol=1e-5)

    # 2) class_weight + sample weight, reduction='none'
    cw_list = [0.5 + 0.1 * i for i in range(C)]
    ce_loss_w = CrossEntropyLoss(class_weight=cw_list, loss_weight=2.0)
    out_none = ce_loss_w(logits, labels, weight=sample_w,
                         reduction_override='none')
    ref_none = 2.0 * (jnp.asarray(cw_list)[labels] * ref_per * sample_w)
    assert jnp.allclose(out_none, ref_none, rtol=1e-4, atol=1e-5)

    # 3) sigmoid (BCE-with-logits) variant with pos_weight, mean (fused rowsum)
    pw_list = [1.0 + 0.05 * i for i in range(C)]
    bce_loss = CrossEntropyLoss(use_sigmoid=True, pos_weight=pw_list)
    out_bce = bce_loss(logits, bin_labels)
    pw_arr = jnp.asarray(pw_list, jnp.float32)[None, :]
    ref_bce = (pw_arr * bin_labels * jax.nn.softplus(-logits)
               + (1.0 - bin_labels) * jax.nn.softplus(logits)).mean()
    assert jnp.allclose(out_bce, ref_bce, rtol=1e-4, atol=1e-5)

    # 3b) BCE reduction='none' with class_weight + fused sample weight
    bce_none = CrossEntropyLoss(use_sigmoid=True, class_weight=cw_list)
    out_bce_none = bce_none(logits, bin_labels, weight=sample_w,
                            reduction_override='none')
    cw_arr = jnp.asarray(cw_list, jnp.float32)[None, :]
    ref_bce_none = cw_arr * (bin_labels * jax.nn.softplus(-logits)
                             + (1.0 - bin_labels) * jax.nn.softplus(logits))
    ref_bce_none = ref_bce_none * sample_w[:, None]
    assert jnp.allclose(out_bce_none, ref_bce_none, rtol=1e-4, atol=1e-5)

    # 4) soft-label variant
    soft_loss = CrossEntropyLoss(use_soft=True)
    soft_labels = jax.nn.one_hot(labels, C) * 0.9 + 0.1 / C
    out_soft = soft_loss(logits, soft_labels)
    ref_soft = (-soft_labels * jax.nn.log_softmax(logits, -1)).sum(-1).mean()
    assert jnp.allclose(out_soft, ref_soft, rtol=1e-4, atol=1e-5)

    # 5) multi-tile grid + ragged (partial) last tile + bf16 logits
    N2 = 40
    logits2 = jax.random.normal(k5, (N2, C), dtype=jnp.float32
                                ).astype(jnp.bfloat16)
    labels2 = jax.random.randint(k6, (N2,), 0, C, dtype=jnp.int32)
    out2 = cross_entropy(logits2, labels2, reduction='none', _max_tile_n=16)
    ref2 = -jnp.take_along_axis(
        jax.nn.log_softmax(logits2.astype(jnp.float32), axis=-1),
        labels2[:, None], axis=-1)[:, 0]
    assert jnp.allclose(out2, ref2, rtol=1e-4, atol=1e-4)

    # 6) BCE reduction='none', multi-tile ragged tail, fused sample weight
    logits2f = jax.random.normal(k6, (N2, C), dtype=jnp.float32)
    bin_labels2 = (jax.random.uniform(k4, (N2, C)) > 0.5).astype(jnp.float32)
    sw2 = jax.random.uniform(k3, (N2,), dtype=jnp.float32)
    out_bce2 = binary_cross_entropy(logits2f, bin_labels2, weight=sw2,
                                    reduction='none', _max_tile_n=16)
    ref_bce2 = (bin_labels2 * jax.nn.softplus(-logits2f)
                + (1.0 - bin_labels2) * jax.nn.softplus(logits2f))
    ref_bce2 = ref_bce2 * sw2[:, None]
    assert jnp.allclose(out_bce2, ref_bce2, rtol=1e-4, atol=1e-5)

    jax.block_until_ready((out_mean, out_none, out_bce, out_bce_none,
                           out_soft, out2, out_bce2))
    print("KERNEL_OK")
</pallas_src>

<mosaic_0001>
module attributes {stable_mosaic.version = 11 : i64} {
  func.func @kernel(%arg0: i32, %arg1: memref<8x16xf32, #tpu.memory_space<vmem>>, %arg2: memref<8x1xi32, #tpu.memory_space<vmem>>, %arg3: memref<8x1xf32, #tpu.memory_space<vmem>>) attributes {dimension_semantics = [#tpu.dimension_semantics<parallel>], iteration_bounds = array<i64: 1>, scalar_prefetch = 0 : i64, scratch_operands = 0 : i64, tpu.core_type = #tpu.core_type<tc>, window_params = [{transform_indices = @transform_0, window_bounds = array<i64: 8, 16>}, {transform_indices = @transform_1, window_bounds = array<i64: 8, 1>}, {transform_indices = @transform_2, window_bounds = array<i64: 8, 1>}]} {
    %c0 = arith.constant 0 : index
    %c0_0 = arith.constant 0 : index
    %0 = vector.load %arg1[%c0, %c0_0] : memref<8x16xf32, #tpu.memory_space<vmem>>, vector<8x16xf32>
    %cst = arith.constant dense<0xFF800000> : vector<8xf32>
    %1 = vector.multi_reduction <maximumf>, %0, %cst [1] : vector<8x16xf32> to vector<8xf32>
    %2 = vector.shape_cast %1 : vector<8xf32> to vector<8x1xf32>
    %3 = vector.broadcast %2 : vector<8x1xf32> to vector<8x16xf32>
    %4 = arith.subf %0, %3 : vector<8x16xf32>
    %5 = math.exp %4 : vector<8x16xf32>
    %cst_1 = arith.constant dense<0.000000e+00> : vector<8xf32>
    %6 = vector.multi_reduction <add>, %5, %cst_1 [1] : vector<8x16xf32> to vector<8xf32>
    %7 = vector.shape_cast %6 : vector<8xf32> to vector<8x1xf32>
    %8 = math.log %7 : vector<8x1xf32>
    %9 = tpu.iota {dimensions = array<i32: 1>} : vector<8x16xi32>
    %c0_2 = arith.constant 0 : index
    %c0_3 = arith.constant 0 : index
    %10 = vector.load %arg2[%c0_2, %c0_3] : memref<8x1xi32, #tpu.memory_space<vmem>>, vector<8x1xi32>
    %11 = vector.broadcast %10 : vector<8x1xi32> to vector<8x16xi32>
    %12 = arith.cmpi eq, %9, %11 : vector<8x16xi32>
    %cst_4 = arith.constant 0.000000e+00 : f32
    %13 = vector.broadcast %cst_4 : f32 to vector<8x16xf32>
    %14 = arith.select %12, %4, %13 : vector<8x16xi1>, vector<8x16xf32>
    %cst_5 = arith.constant dense<0.000000e+00> : vector<8xf32>
    %15 = vector.multi_reduction <add>, %14, %cst_5 [1] : vector<8x16xf32> to vector<8xf32>
    %16 = vector.shape_cast %15 : vector<8xf32> to vector<8x1xf32>
    %17 = arith.subf %8, %16 : vector<8x1xf32>
    %c0_6 = arith.constant 0 : index
    %c0_7 = arith.constant 0 : index
    %18 = vector.load %arg3[%c0_6, %c0_7] : memref<8x1xf32, #tpu.memory_space<vmem>>, vector<8x1xf32>
    tpu.vector_store %arg3[%c0_6, %c0_7], %17 {strides = array<i32>} : memref<8x1xf32, #tpu.memory_space<vmem>>, vector<8x1xf32>,
    return
  }
  func.func @transform_0(%arg0: i32) -> (i32, i32) {
    %c0_i32 = arith.constant 0 : i32
    %c0_i32_0 = arith.constant 0 : i32
    return %arg0, %c0_i32 : i32, i32
  }
  func.func @transform_1(%arg0: i32) -> (i32, i32) {
    %c0_i32 = arith.constant 0 : i32
    %c0_i32_0 = arith.constant 0 : i32
    return %arg0, %c0_i32 : i32, i32
  }
  func.func @transform_2(%arg0: i32) -> (i32, i32) {
    %c0_i32 = arith.constant 0 : i32
    %c0_i32_0 = arith.constant 0 : i32
    return %arg0, %c0_i32 : i32, i32
  }
}

</mosaic_0001>

<llo_original>
// kernel: tpu_custom_call.1
$region0: #{tpu_custom_call.1}
  #allocation0 [shape = 'u32[]', space=smem, size = 0x4, offset = 0x4, fixed_abs, tag = 'smem constant byte address 0x4 - core index']
  #allocation1 [shape = 'u32[72,128]{1,0:T(1,128)}', space=vmem, size = 0x9000, scoped, tag = 'internal scratch']
  %s0 = inlined_call_operand.vmem [shape: f32[8,16], index: 0, kind: input, shape index: {}]
  %s1 = inlined_call_operand.vmem [shape: s32[8,1], index: 1, kind: input, shape index: {}]
  %s2 = inlined_call_operand.vmem [shape: f32[8,1], index: 2, kind: output, shape index: {}]
  %s3 = sld [smem:[#allocation0]]
  $region18: #{tpu_custom_call.1} parent=0
    _
  %s5 = ssub.s32 1, %s3
  %s6 = scalar_select 0, %s5, %s3
  // Predicated region
  $region2: #{tpu_custom_call.1} parent=0 // pred_check
    _
  $region3: #{tpu_custom_call.1} parent=0 // pred_check_branch
    %8 = sbr.rel (0) target = $region5
  $region4: #{tpu_custom_call.1} parent=0 // pred_region
    _
  $region5: #{tpu_custom_call.1} parent=0 // pred_fallthru
    _
  // Predicated region
  $region6: #{tpu_custom_call.1} parent=0 // pred_check
    _
  $region7: #{tpu_custom_call.1} parent=0 // pred_check_branch
    %10 = sbr.rel (0) target = $region9
  $region8: #{tpu_custom_call.1} parent=0 // pred_region
    _
  $region9: #{tpu_custom_call.1} parent=0 // pred_fallthru
    _
  %v11 = vld [vmem:[%s0] sm:$0xff]
  %vm12 = vcmask 130048
  %v13 = vsel %vm12, %v11, -inf
  %14 = vmax.xlane.f32.xlu0 %v13
  %v15 = vpop.xlane.xlu0 %14
  %v16 = vsub.f32 %v11, %v15
  %v17 = vmul.f32 %v16, 1.442695
  %v18 = vpow.pop %v17
  %v19 = vsel %vm12, %v18, 0.0
  %20 = vadd.xlane.f32.xlu0 %v19
  %v21 = vpop.xlane.xlu0 %20
  %v22 = vlog2.pop %v21
  %v23 = vmul.f32 %v22, 0.6931472
  %v24 = vlaneseq
  %v25 = vand.u32 %v24, 127
  %v26 = vld [vmem:[%s1] sm:$0xff]
  %27 = vset.pattern.permute.xlu0 0
  %28 = vperm.xlu0 %27, %v26
  %v29 = vpop.permute.xlu0 %28
  %vm30 = vcmp.eq.s32.totalorder %v25, %v29
  %v31 = vsel %vm30, %v16, 0.0
  %v32 = vsel %vm12, %v31, 0.0
  %33 = vadd.xlane.f32.xlu0 %v32
  %v34 = vpop.xlane.xlu0 %33
  %v35 = vsub.f32 %v23, %v34
  %vm36 = vcmask 7168
  %37 = vst.msk [vmem:[%s2] sm:$0xff] %vm36, %v35
  // Predicated region
  $region10: #{tpu_custom_call.1} parent=0 // pred_check
    _
  $region11: #{tpu_custom_call.1} parent=0 // pred_check_branch
    %39 = sbr.rel (0) target = $region13
  $region12: #{tpu_custom_call.1} parent=0 // pred_region
    _
  $region13: #{tpu_custom_call.1} parent=0 // pred_fallthru
    _
  // Predicated region
  $region14: #{tpu_custom_call.1} parent=0 // pred_check
    _
  $region15: #{tpu_custom_call.1} parent=0 // pred_check_branch
    %41 = sbr.rel (0) target = $region17
  $region16: #{tpu_custom_call.1} parent=0 // pred_region
    _
  $region17: #{tpu_custom_call.1} parent=0 // pred_fallthru
    _

</llo_original>
